<compile_context>
chip_gen: v5e
topology: v5e:2x2
jax: 0.10.0
libtpu: 0.0.40
codegen_flags: <defaults>
</compile_context>

<pallas_src>
import math

import jax
import jax.numpy as jnp
from jax.experimental import pallas as pl
from jax.experimental.pallas import tpu as pltpu


def _round_up(x, m):
    return (x + m - 1) // m * m


# ---------------------------------------------------------------------------
# Kernels
# ---------------------------------------------------------------------------
def ffn_kernel_single(x_ref, w1_ref, b1_ref, w2_ref, b2_ref, o_ref):
    """d_ff fits a single chunk: no accumulator scratch, single pass."""
    h = jnp.dot(x_ref[...], w1_ref[...], preferred_element_type=jnp.float32)
    h = jnp.maximum(h + b1_ref[...], 0.0)
    o = jnp.dot(h.astype(w2_ref.dtype), w2_ref[...],
                preferred_element_type=jnp.float32) + b2_ref[...]
    o_ref[...] = o.astype(o_ref.dtype)


def ffn_kernel_multi(x_ref, w1_ref, b1_ref, w2_ref, b2_ref, o_ref, acc_ref):
    """d_ff streamed in chunks along grid axis 1 (reduction, 'arbitrary')."""
    j = pl.program_id(1)

    h = jnp.dot(x_ref[...], w1_ref[...], preferred_element_type=jnp.float32)
    h = jnp.maximum(h + b1_ref[...], 0.0)
    part = jnp.dot(h.astype(w2_ref.dtype), w2_ref[...],
                   preferred_element_type=jnp.float32)

    @pl.when(j == 0)
    def _first_chunk():
        # First chunk writes the accumulator (and folds in b2) instead of a
        # separate zero-init + finalize add: one fewer (TM, Dm) store/load.
        acc_ref[...] = part + b2_ref[...]

    @pl.when(j > 0)
    def _accumulate():
        acc_ref[...] += part

    @pl.when(j == pl.num_programs(1) - 1)
    def _finalize():
        o_ref[...] = acc_ref[...].astype(o_ref.dtype)


# ---------------------------------------------------------------------------
# Chip-aware tile selection
# ---------------------------------------------------------------------------
def _chip_config():
    """Per-generation roofline target for TM and VMEM budget."""
    kind = ""
    try:
        kind = jax.devices()[0].device_kind.lower()
    except Exception:
        pass
    vmem_bytes = 64 * 1024 * 1024  # conservative (v7x) if query fails
    try:
        vmem_bytes = int(pltpu.get_tpu_info().vmem_capacity_bytes)
    except Exception:
        pass

    # TM balance point ~ itemsize * peak_flops / HBM_BW (bf16):
    #   v6e: 918 TF/s / 1.4 TB/s -> ~640 ; v7x: 996 TF/s / 3.2 TB/s -> ~384 ;
    #   v5e: 197 TF/s / 0.82 TB/s -> ~256.
    if "v6" in kind:
        tm_target = 640
    elif "v5" in kind:
        tm_target = 256
    else:  # v7x / unknown
        tm_target = 384

    if vmem_bytes >= 100 * 1024 * 1024:      # v5e / v6e: 128 MiB physical
        budget = 56 * 1024 * 1024
        vmem_cap = 100 * 1024 * 1024
    else:                                    # v7x: 64 MiB physical
        budget = 20 * 1024 * 1024
        vmem_cap = 48 * 1024 * 1024
    return {"tm_target": tm_target, "budget": budget, "vmem_cap": vmem_cap}


def _choose_tf(d_model_pad, d_ff, w_itemsize, cfg, max_tf=None):
    # Multiple of 128, capped at 512 (bounds the f32 `h` intermediate), and
    # bounded so the double-buffered W1/W2 chunks fit half the VMEM budget.
    per_tf_bytes = 4 * d_model_pad * w_itemsize        # (w1 + w2) x 2 buffers
    tf_budget = max(128, (cfg["budget"] // 2 // max(per_tf_bytes, 1)) // 128 * 128)
    tf = min(512, tf_budget, _round_up(d_ff, 128))
    if max_tf is not None:
        tf = min(tf, max(128, (max_tf // 128) * 128))
    return tf


def _choose_tm(m, d_model_pad, tf, x_itemsize, w_itemsize, out_itemsize, cfg):
    # Sublane packing of the compute dtype: bf16 packs 2 rows / sublane.
    row_align = {1: 32, 2: 16}.get(x_itemsize, 8)
    if m <= row_align:
        return row_align
    # Guarantee >= 2 token tiles when M spans more than one tile so both v7x
    # TensorCores get work (dim 0 is the only 'parallel' axis), otherwise hit
    # the per-chip roofline target.
    tm = max(row_align, min(cfg["tm_target"], _round_up((m + 1) // 2, row_align)))
    # Clamp to the VMEM budget: weight tiles are fixed per TF; x/out/acc/h
    # tiles scale with TM.
    weight_bytes = (4 * d_model_pad * tf * w_itemsize   # w1 + w2 double bufs
                    + 2 * tf * 4 + 2 * d_model_pad * 4)  # b1 / b2
    per_row = d_model_pad * (2 * x_itemsize + 2 * out_itemsize + 4) + tf * 4
    tm_budget = max(cfg["budget"] - weight_bytes, per_row * row_align)
    tm_max = max(row_align, (tm_budget // per_row) // row_align * row_align)
    return min(tm, tm_max)


# ---------------------------------------------------------------------------
# Wrappers
# ---------------------------------------------------------------------------
def prepare_ffn_params(w1, b1, w2, b2, *, compute_dtype=jnp.bfloat16, max_tf=None):
    """Cast + pad the FFN parameters ONCE (hoisted out of the per-call path)."""
    d_model, d_ff = w1.shape
    cfg = _chip_config()
    cdt = jnp.dtype(compute_dtype if compute_dtype is not None else w1.dtype)
    d_model_pad = _round_up(d_model, 128)
    tf = _choose_tf(d_model_pad, d_ff, cdt.itemsize, cfg, max_tf)
    d_ff_pad = _round_up(d_ff, tf)

    w1p = jnp.pad(w1.astype(cdt),
                  ((0, d_model_pad - d_model), (0, d_ff_pad - d_ff)))
    w2p = jnp.pad(w2.astype(cdt),
                  ((0, d_ff_pad - d_ff), (0, d_model_pad - d_model)))
    b1p = jnp.pad(jnp.reshape(b1, (1, d_ff)).astype(jnp.float32),
                  ((0, 0), (0, d_ff_pad - d_ff)))
    b2p = jnp.pad(jnp.reshape(b2, (1, d_model)).astype(jnp.float32),
                  ((0, 0), (0, d_model_pad - d_model)))
    return {
        "w1": w1p, "b1": b1p, "w2": w2p, "b2": b2p,
        "d_model": d_model, "d_ff": d_ff,
        "d_model_pad": d_model_pad, "d_ff_pad": d_ff_pad,
        "tf": tf, "compute_dtype": cdt, "cfg": cfg,
    }


def feed_forward(x, params):
    """y = relu(x @ w1 + b1) @ w2 + b2 ; x: (B, S, d_model) -> (B, S, d_model)."""
    B, S, d_model = x.shape
    assert d_model == params["d_model"]
    out_dtype = x.dtype
    cfg = params["cfg"]
    cdt = params["compute_dtype"]
    Dm = params["d_model_pad"]
    TF = params["tf"]
    d_ff_pad = params["d_ff_pad"]

    M = B * S
    x_itemsize = cdt.itemsize
    w_itemsize = cdt.itemsize
    out_itemsize = jnp.dtype(out_dtype).itemsize
    TM = _choose_tm(M, Dm, TF, x_itemsize, w_itemsize, out_itemsize, cfg)
    M_pad = _round_up(M, TM)

    x2d = x.reshape(M, d_model).astype(cdt)
    x2d = jnp.pad(x2d, ((0, M_pad - M), (0, Dm - d_model)))

    n_ff_chunks = d_ff_pad // TF
    n_m_tiles = M_pad // TM

    # Advisory cost estimate for the XLA scheduler (weights re-streamed per
    # token tile).
    flops = 4 * M * d_model * params["d_ff"]
    bytes_accessed = int(
        M_pad * Dm * x_itemsize
        + n_m_tiles * (params["w1"].size + params["w2"].size) * w_itemsize
        + params["b1"].size * 4 + params["b2"].size * 4
        + M_pad * Dm * out_itemsize)

    # VMEM sizing: double-buffered tiles + h intermediate (+ accumulator).
    need = (2 * TM * Dm * x_itemsize           # x tiles
            + 4 * Dm * TF * w_itemsize         # w1 + w2 tiles
            + 2 * TF * 4 + 2 * Dm * 4          # b1 / b2 tiles
            + 2 * TM * Dm * out_itemsize       # out tiles
            + TM * TF * 4)                     # h intermediate
    if n_ff_chunks > 1:
        need += TM * Dm * 4                    # f32 accumulator scratch
    vmem_limit = int(min(cfg["vmem_cap"],
                         max(32 * 1024 * 1024, need + need // 4)))

    cost = pl.CostEstimate(flops=flops, transcendentals=0,
                           bytes_accessed=bytes_accessed)

    if n_ff_chunks == 1:
        out2d = pl.pallas_call(
            ffn_kernel_single,
            out_shape=jax.ShapeDtypeStruct((M_pad, Dm), out_dtype),
            grid_spec=pltpu.PrefetchScalarGridSpec(
                num_scalar_prefetch=0,
                grid=(n_m_tiles,),
                in_specs=[
                    pl.BlockSpec((TM, Dm), lambda i: (i, 0)),     # x
                    pl.BlockSpec((Dm, TF), lambda i: (0, 0)),     # w1
                    pl.BlockSpec((1, TF), lambda i: (0, 0)),      # b1
                    pl.BlockSpec((TF, Dm), lambda i: (0, 0)),     # w2
                    pl.BlockSpec((1, Dm), lambda i: (0, 0)),      # b2
                ],
                out_specs=pl.BlockSpec((TM, Dm), lambda i: (i, 0)),
            ),
            compiler_params=pltpu.CompilerParams(
                dimension_semantics=("parallel",),
                vmem_limit_bytes=vmem_limit),
            cost_estimate=cost,
        )(x2d, params["w1"], params["b1"], params["w2"], params["b2"])
    else:
        out2d = pl.pallas_call(
            ffn_kernel_multi,
            out_shape=jax.ShapeDtypeStruct((M_pad, Dm), out_dtype),
            grid_spec=pltpu.PrefetchScalarGridSpec(
                num_scalar_prefetch=0,
                grid=(n_m_tiles, n_ff_chunks),
                in_specs=[
                    pl.BlockSpec((TM, Dm), lambda i, j: (i, 0)),   # x
                    pl.BlockSpec((Dm, TF), lambda i, j: (0, j)),   # w1
                    pl.BlockSpec((1, TF), lambda i, j: (0, j)),    # b1
                    pl.BlockSpec((TF, Dm), lambda i, j: (j, 0)),   # w2
                    pl.BlockSpec((1, Dm), lambda i, j: (0, 0)),    # b2
                ],
                out_specs=pl.BlockSpec((TM, Dm), lambda i, j: (i, 0)),
                scratch_shapes=[pltpu.VMEM((TM, Dm), jnp.float32)],
            ),
            compiler_params=pltpu.CompilerParams(
                dimension_semantics=("parallel", "arbitrary"),
                vmem_limit_bytes=vmem_limit),
            cost_estimate=cost,
        )(x2d, params["w1"], params["b1"], params["w2"], params["b2"])

    return out2d[:M, :d_model].reshape(B, S, d_model)


def feed_forward_from_weights(x, w1, b1, w2, b2, *,
                              compute_dtype=jnp.bfloat16, max_tf=None):
    """Convenience wrapper: pad/cast params then run the kernel."""
    params = prepare_ffn_params(w1, b1, w2, b2,
                                compute_dtype=compute_dtype, max_tf=max_tf)
    return feed_forward(x, params)


if __name__ == "__main__":
    key = jax.random.PRNGKey(0)
    kx, kw1, kb1, kw2, kb2 = jax.random.split(key, 5)

    # Small shapes consistent with FeedForward.forward: [batch, seq, d_model].
    B, S, d_model, d_ff = 2, 8, 32, 64
    x = jax.random.normal(kx, (B, S, d_model), dtype=jnp.float32)
    lim1 = 1.0 / math.sqrt(d_model)
    lim2 = 1.0 / math.sqrt(d_ff)
    w1 = jax.random.uniform(kw1, (d_model, d_ff), minval=-lim1, maxval=lim1,
                            dtype=jnp.float32)
    b1 = jax.random.uniform(kb1, (d_ff,), minval=-lim1, maxval=lim1,
                            dtype=jnp.float32)
    w2 = jax.random.uniform(kw2, (d_ff, d_model), minval=-lim2, maxval=lim2,
                            dtype=jnp.float32)
    b2 = jax.random.uniform(kb2, (d_model,), minval=-lim2, maxval=lim2,
                            dtype=jnp.float32)

    # Pure-JAX reference of the same semantics.
    ref = jnp.maximum(x @ w1 + b1, 0.0) @ w2 + b2

    # Default path: bf16 compute, f32 accumulation (single d_ff chunk kernel).
    out_bf16 = jax.block_until_ready(feed_forward_from_weights(x, w1, b1, w2, b2))
    assert out_bf16.shape == (B, S, d_model)
    assert out_bf16.dtype == x.dtype
    assert jnp.allclose(out_bf16.astype(jnp.float32), ref, atol=5e-2, rtol=5e-2)

    # f32 compute path: near-exact semantics check.
    out_f32 = jax.block_until_ready(
        feed_forward_from_weights(x, w1, b1, w2, b2, compute_dtype=jnp.float32))
    assert jnp.allclose(out_f32, ref, atol=1e-4, rtol=1e-4)

    # Streamed-d_ff (accumulator) path: force TF=128 so grid[1] > 1.
    d_ff2 = 256
    w1b = jax.random.uniform(kw1, (d_model, d_ff2), minval=-lim1, maxval=lim1,
                             dtype=jnp.float32)
    b1b = jax.random.uniform(kb1, (d_ff2,), minval=-lim1, maxval=lim1,
                             dtype=jnp.float32)
    w2b = jax.random.uniform(kw2, (d_ff2, d_model), minval=-lim2, maxval=lim2,
                             dtype=jnp.float32)
    ref2 = jnp.maximum(x @ w1b + b1b, 0.0) @ w2b + b2
    out_multi = jax.block_until_ready(
        feed_forward_from_weights(x, w1b, b1b, w2b, b2,
                                  compute_dtype=jnp.float32, max_tf=128))
    assert jnp.allclose(out_multi, ref2, atol=1e-4, rtol=1e-4)

    print("KERNEL_OK")
</pallas_src>

<mosaic_0001>
module attributes {stable_mosaic.version = 11 : i64} {
  func.func @ffn_kernel_single(%arg0: i32, %arg1: memref<16x128xbf16, #tpu.memory_space<vmem>>, %arg2: memref<128x128xbf16, #tpu.memory_space<vmem>>, %arg3: memref<1x128xf32, #tpu.memory_space<vmem>>, %arg4: memref<128x128xbf16, #tpu.memory_space<vmem>>, %arg5: memref<1x128xf32, #tpu.memory_space<vmem>>, %arg6: memref<16x128xf32, #tpu.memory_space<vmem>>) attributes {dimension_semantics = [#tpu.dimension_semantics<parallel>], iteration_bounds = array<i64: 1>, scalar_prefetch = 0 : i64, scratch_operands = 0 : i64, tpu.core_type = #tpu.core_type<tc>, window_params = [{transform_indices = @transform_0, window_bounds = array<i64: 16, 128>}, {pipeline_mode = #tpu.pipeline_mode<synchronous>, transform_indices = @transform_1, window_bounds = array<i64: 128, 128>}, {pipeline_mode = #tpu.pipeline_mode<synchronous>, transform_indices = @transform_2, window_bounds = array<i64: 1, 128>}, {pipeline_mode = #tpu.pipeline_mode<synchronous>, transform_indices = @transform_3, window_bounds = array<i64: 128, 128>}, {pipeline_mode = #tpu.pipeline_mode<synchronous>, transform_indices = @transform_4, window_bounds = array<i64: 1, 128>}, {transform_indices = @transform_5, window_bounds = array<i64: 16, 128>}]} {
    %c0 = arith.constant 0 : index
    %c0_0 = arith.constant 0 : index
    %0 = vector.load %arg1[%c0, %c0_0] : memref<16x128xbf16, #tpu.memory_space<vmem>>, vector<16x128xbf16>
    %c0_1 = arith.constant 0 : index
    %c0_2 = arith.constant 0 : index
    %1 = vector.load %arg2[%c0_1, %c0_2] : memref<128x128xbf16, #tpu.memory_space<vmem>>, vector<128x128xbf16>
    %cst = arith.constant dense<0.000000e+00> : vector<16x128xf32>
    %2 = tpu.matmul %0, %1, %cst {dimension_numbers = #tpu.dot_dimension_numbers<[1], [0], [0], [1], [0, 0, 1, 1], [], []>} : vector<16x128xbf16>, vector<128x128xbf16>, vector<16x128xf32> -> vector<16x128xf32>
    %c0_3 = arith.constant 0 : index
    %c0_4 = arith.constant 0 : index
    %3 = vector.load %arg3[%c0_3, %c0_4] : memref<1x128xf32, #tpu.memory_space<vmem>>, vector<1x128xf32>
    %4 = vector.broadcast %3 : vector<1x128xf32> to vector<16x128xf32>
    %5 = arith.addf %2, %4 : vector<16x128xf32>
    %cst_5 = arith.constant 0.000000e+00 : f32
    %6 = vector.broadcast %cst_5 : f32 to vector<16x128xf32>
    %7 = arith.maximumf %5, %6 : vector<16x128xf32>
    %8 = arith.truncf %7 : vector<16x128xf32> to vector<16x128xbf16>
    %c0_6 = arith.constant 0 : index
    %c0_7 = arith.constant 0 : index
    %9 = vector.load %arg4[%c0_6, %c0_7] : memref<128x128xbf16, #tpu.memory_space<vmem>>, vector<128x128xbf16>
    %cst_8 = arith.constant dense<0.000000e+00> : vector<16x128xf32>
    %10 = tpu.matmul %8, %9, %cst_8 {dimension_numbers = #tpu.dot_dimension_numbers<[1], [0], [0], [1], [0, 0, 1, 1], [], []>} : vector<16x128xbf16>, vector<128x128xbf16>, vector<16x128xf32> -> vector<16x128xf32>
    %c0_9 = arith.constant 0 : index
    %c0_10 = arith.constant 0 : index
    %11 = vector.load %arg5[%c0_9, %c0_10] : memref<1x128xf32, #tpu.memory_space<vmem>>, vector<1x128xf32>
    %12 = vector.broadcast %11 : vector<1x128xf32> to vector<16x128xf32>
    %13 = arith.addf %10, %12 : vector<16x128xf32>
    %c0_11 = arith.constant 0 : index
    %c0_12 = arith.constant 0 : index
    %14 = vector.load %arg6[%c0_11, %c0_12] : memref<16x128xf32, #tpu.memory_space<vmem>>, vector<16x128xf32>
    tpu.vector_store %arg6[%c0_11, %c0_12], %13 {strides = array<i32>} : memref<16x128xf32, #tpu.memory_space<vmem>>, vector<16x128xf32>,
    return
  }
  func.func @transform_0(%arg0: i32) -> (i32, i32) {
    %c0_i32 = arith.constant 0 : i32
    %c0_i32_0 = arith.constant 0 : i32
    return %arg0, %c0_i32 : i32, i32
  }
  func.func @transform_1(%arg0: i32) -> (i32, i32) {
    %c0_i32 = arith.constant 0 : i32
    %c0_i32_0 = arith.constant 0 : i32
    %c0_i32_1 = arith.constant 0 : i32
    return %c0_i32, %c0_i32_0 : i32, i32
  }
  func.func @transform_2(%arg0: i32) -> (i32, i32) {
    %c0_i32 = arith.constant 0 : i32
    %c0_i32_0 = arith.constant 0 : i32
    %c0_i32_1 = arith.constant 0 : i32
    return %c0_i32, %c0_i32_0 : i32, i32
  }
  func.func @transform_3(%arg0: i32) -> (i32, i32) {
    %c0_i32 = arith.constant 0 : i32
    %c0_i32_0 = arith.constant 0 : i32
    %c0_i32_1 = arith.constant 0 : i32
    return %c0_i32, %c0_i32_0 : i32, i32
  }
  func.func @transform_4(%arg0: i32) -> (i32, i32) {
    %c0_i32 = arith.constant 0 : i32
    %c0_i32_0 = arith.constant 0 : i32
    %c0_i32_1 = arith.constant 0 : i32
    return %c0_i32, %c0_i32_0 : i32, i32
  }
  func.func @transform_5(%arg0: i32) -> (i32, i32) {
    %c0_i32 = arith.constant 0 : i32
    %c0_i32_0 = arith.constant 0 : i32
    return %arg0, %c0_i32 : i32, i32
  }
}

</mosaic_0001>

<llo_original>
// kernel: tpu_custom_call.1
$region0: #{tpu_custom_call.1}
  #allocation0 [shape = 'u32[]', space=smem, size = 0x4, offset = 0x4, fixed_abs, tag = 'smem constant byte address 0x4 - core index']
  #allocation1 [shape = 'u32[72,128]{1,0:T(1,128)}', space=vmem, size = 0x9000, scoped, tag = 'internal scratch']
  %s0 = inlined_call_operand.hbm [shape: bf16[16,128], index: 0, kind: input, shape index: {}]
  %s1 = inlined_call_operand.hbm [shape: bf16[128,128], index: 1, kind: input, shape index: {}]
  %s2 = inlined_call_operand.vmem [shape: f32[1,128], index: 2, kind: input, shape index: {}]
  %s3 = inlined_call_operand.hbm [shape: bf16[128,128], index: 3, kind: input, shape index: {}]
  %s4 = inlined_call_operand.vmem [shape: f32[1,128], index: 4, kind: input, shape index: {}]
  %s5 = inlined_call_operand.hbm [shape: f32[16,128], index: 5, kind: output, shape index: {}]
  %s6 = sld [smem:[#allocation0]]
  $region42: #{tpu_custom_call.1} parent=0
    _
  %s8 = ssub.s32 1, %s6
  %s9 = scalar_select 0, %s8, %s6
  $region1: #{tpu_custom_call.1} parent=0
    #allocation2 [shape = 'u8[4096]{0}', space=vmem, size = 0x1000, scoped, tag = 'input window, operand 0, single buffered']
    #allocation3 [shape = 's32[1]{0}', space=sflag, size = 0x4, scoped, tag = 'scoped memory for tpu_custom_call.1']
    #allocation4 [shape = 's32[1]{0}', space=sflag, size = 0x4, scoped, tag = 'scoped memory for tpu_custom_call.1']
    #allocation5 [shape = 'u8[32768]{0}', space=vmem, size = 0x8000, scoped, tag = 'input window, operand 1, single buffered']
    #allocation6 [shape = 's32[1]{0}', space=sflag, size = 0x4, scoped, tag = 'scoped memory for tpu_custom_call.1']
    #allocation7 [shape = 'u8[32768]{0}', space=vmem, size = 0x8000, scoped, tag = 'input window, operand 3, single buffered']
    #allocation8 [shape = 'u8[8192]{0}', space=vmem, size = 0x2000, scoped, tag = 'output window, operand 0, single buffered']
    %10 = vsyncpa [#allocation3], 0
    %11 = vsyncpa [#allocation6], 0
    %12 = vsyncpa [#allocation4], 0
    // Predicated region
    $region2: #{tpu_custom_call.1} parent=1 // pred_check
      _
    $region3: #{tpu_custom_call.1} parent=1 // pred_check_branch
      %14 = sbr.rel (0) target = $region5
    $region4: #{tpu_custom_call.1} parent=1 // pred_region
      %16 = vsyncadd [#allocation3], 0
      %s17 = sshll.u32 %s0, 4
      %s18 = int_to_ptr.hbm [resolvable:$true] %s17
      %s19 = sshll.u32 [#allocation2], 4
      %s20 = int_to_ptr.vmem [resolvable:$true] %s19
      %25 = dma.hbm_to_vmem [thread:$0]  %s18, 128, %s20, [#allocation3], 64, 64, 4
    $region5: #{tpu_custom_call.1} parent=1 // pred_fallthru
      _
    // Predicated region
    $region6: #{tpu_custom_call.1} parent=1 // pred_check
      _
    $region7: #{tpu_custom_call.1} parent=1 // pred_check_branch
      %27 = sbr.rel (0) target = $region9
    $region8: #{tpu_custom_call.1} parent=1 // pred_region
      %29 = vsyncadd [#allocation6], 0
      %s30 = sshll.u32 %s1, 4
      %s31 = int_to_ptr.hbm [resolvable:$true] %s30
      %s32 = sshll.u32 [#allocation5], 4
      %s33 = int_to_ptr.vmem [resolvable:$true] %s32
      %38 = dma.hbm_to_vmem [thread:$0]  %s31, 1024, %s33, [#allocation6], 64, 64, 4
    $region9: #{tpu_custom_call.1} parent=1 // pred_fallthru
      _
    // Predicated region
    $region10: #{tpu_custom_call.1} parent=1 // pred_check
      _
    $region11: #{tpu_custom_call.1} parent=1 // pred_check_branch
      %40 = sbr.rel (0) target = $region13
    $region12: #{tpu_custom_call.1} parent=1 // pred_region
      _
    $region13: #{tpu_custom_call.1} parent=1 // pred_fallthru
      _
    // Predicated region
    $region14: #{tpu_custom_call.1} parent=1 // pred_check
      _
    $region15: #{tpu_custom_call.1} parent=1 // pred_check_branch
      %42 = sbr.rel (0) target = $region17
    $region16: #{tpu_custom_call.1} parent=1 // pred_region
      %44 = vsyncadd [#allocation6], 0
      %s45 = sshll.u32 %s3, 4
      %s46 = int_to_ptr.hbm [resolvable:$true] %s45
      %s47 = sshll.u32 [#allocation7], 4
      %s48 = int_to_ptr.vmem [resolvable:$true] %s47
      %53 = dma.hbm_to_vmem [thread:$0]  %s46, 1024, %s48, [#allocation6], 64, 64, 4
    $region17: #{tpu_custom_call.1} parent=1 // pred_fallthru
      _
    // Predicated region
    $region18: #{tpu_custom_call.1} parent=1 // pred_check
      _
    $region19: #{tpu_custom_call.1} parent=1 // pred_check_branch
      %55 = sbr.rel (0) target = $region21
    $region20: #{tpu_custom_call.1} parent=1 // pred_region
      _
    $region21: #{tpu_custom_call.1} parent=1 // pred_fallthru
      _
    // Predicated region
    $region22: #{tpu_custom_call.1} parent=1 // pred_check
      _
    $region23: #{tpu_custom_call.1} parent=1 // pred_check_branch
      %57 = sbr.rel (0) target = $region25
    $region24: #{tpu_custom_call.1} parent=1 // pred_region
      %59 = dma.done [#allocation3], 128
    $region25: #{tpu_custom_call.1} parent=1 // pred_fallthru
      _
    // Predicated region
    $region26: #{tpu_custom_call.1} parent=1 // pred_check
      _
    $region27: #{tpu_custom_call.1} parent=1 // pred_check_branch
      %61 = sbr.rel (0) target = $region29
    $region28: #{tpu_custom_call.1} parent=1 // pred_region
      %63 = dma.done [#allocation6], 1024
    $region29: #{tpu_custom_call.1} parent=1 // pred_fallthru
      _
    // Predicated region
    $region30: #{tpu_custom_call.1} parent=1 // pred_check
      _
    $region31: #{tpu_custom_call.1} parent=1 // pred_check_branch
      %65 = sbr.rel (0) target = $region33
    $region32: #{tpu_custom_call.1} parent=1 // pred_region
      %67 = dma.done [#allocation6], 1024
    $region33: #{tpu_custom_call.1} parent=1 // pred_fallthru
      _
    %v68 = vld [vmem:[#allocation2] sm:$0xf]
    %v69 = vld [vmem:[#allocation2 + $0x4] sm:$0xf]
    %v70 = vld [vmem:[#allocation5] sm:$0xf]
    %v71 = vld [vmem:[#allocation5 + $0x4] sm:$0xf]
    %v72 = vld [vmem:[#allocation5 + $0x8] sm:$0xf]
    %v73 = vld [vmem:[#allocation5 + $0xc] sm:$0xf]
    %v74 = vld [vmem:[#allocation5 + $0x10] sm:$0xf]
    %v75 = vld [vmem:[#allocation5 + $0x14] sm:$0xf]
    %v76 = vld [vmem:[#allocation5 + $0x18] sm:$0xf]
    %v77 = vld [vmem:[#allocation5 + $0x1c] sm:$0xf]
    %v78 = vld [vmem:[#allocation5 + $0x20] sm:$0xf]
    %v79 = vld [vmem:[#allocation5 + $0x24] sm:$0xf]
    %v80 = vld [vmem:[#allocation5 + $0x28] sm:$0xf]
    %v81 = vld [vmem:[#allocation5 + $0x2c] sm:$0xf]
    %v82 = vld [vmem:[#allocation5 + $0x30] sm:$0xf]
    %v83 = vld [vmem:[#allocation5 + $0x34] sm:$0xf]
    %v84 = vld [vmem:[#allocation5 + $0x38] sm:$0xf]
    %v85 = vld [vmem:[#allocation5 + $0x3c] sm:$0xf]
    %v86 = vld [vmem:[%s2] sm:$0x1]
    %v88 = vperm.slane %v86, 0
    %v92 = vunpack.c.l.b16 %v68
    %v93 = vunpack.c.l.b16 %v69
    %v94 = vpack.c.b16 %v93, %v92
    %v112 = vunpack.c.l.b16 %v70
    %v113 = vunpack.c.l.b16 %v71
    %v114 = vunpack.c.l.b16 %v72
    %v115 = vunpack.c.l.b16 %v73
    %v116 = vunpack.c.l.b16 %v74
    %v117 = vunpack.c.l.b16 %v75
    %v118 = vunpack.c.l.b16 %v76
    %v119 = vunpack.c.l.b16 %v77
    %v120 = vunpack.c.l.b16 %v78
    %v121 = vunpack.c.l.b16 %v79
    %v122 = vunpack.c.l.b16 %v80
    %v123 = vunpack.c.l.b16 %v81
    %v124 = vunpack.c.l.b16 %v82
    %v125 = vunpack.c.l.b16 %v83
    %v126 = vunpack.c.l.b16 %v84
    %v127 = vunpack.c.l.b16 %v85
    %v128 = vpack.c.b16 %v113, %v112
    %v129 = vpack.c.b16 %v115, %v114
    %v130 = vpack.c.b16 %v117, %v116
    %v131 = vpack.c.b16 %v119, %v118
    %v132 = vpack.c.b16 %v121, %v120
    %v133 = vpack.c.b16 %v123, %v122
    %v134 = vpack.c.b16 %v125, %v124
    %v135 = vpack.c.b16 %v127, %v126
    %144 = vmatpush.bf16.msra.mxu0 %v135
    %145 = vmatpush.bf16.msra.mxu0 %v134
    %146 = vmatpush.bf16.msra.mxu0 %v133
    %147 = vmatpush.bf16.msra.mxu0 %v132
    %148 = vmatpush.bf16.msra.mxu0 %v131
    %149 = vmatpush.bf16.msra.mxu0 %v130
    %150 = vmatpush.bf16.msra.mxu0 %v129
    %151 = vmatpush.bf16.msra.mxu0 %v128
    %152 = vmatmul.bf16.gmra.mxu0 %v94
    %v153 = vpop.f32.mrf.mxu0
    %v154 = vadd.f32 %v88, %v153
    %v155 = vpop.f32.mrf.mxu0
    %v156 = vadd.f32 %v88, %v155
    %157 = vdwg.mxu0
    %v158 = vmax.f32 %v154, 0.0
    %v159 = vmax.f32 %v156, 0.0
    %v160 = vpack.c.bf16 %v159, %v158
    %v161 = vld [vmem:[#allocation7] sm:$0xf]
    %v162 = vld [vmem:[#allocation7 + $0x4] sm:$0xf]
    %v163 = vld [vmem:[#allocation7 + $0x8] sm:$0xf]
    %v164 = vld [vmem:[#allocation7 + $0xc] sm:$0xf]
    %v165 = vld [vmem:[#allocation7 + $0x10] sm:$0xf]
    %v166 = vld [vmem:[#allocation7 + $0x14] sm:$0xf]
    %v167 = vld [vmem:[#allocation7 + $0x18] sm:$0xf]
    %v168 = vld [vmem:[#allocation7 + $0x1c] sm:$0xf]
    %v169 = vld [vmem:[#allocation7 + $0x20] sm:$0xf]
    %v170 = vld [vmem:[#allocation7 + $0x24] sm:$0xf]
    %v171 = vld [vmem:[#allocation7 + $0x28] sm:$0xf]
    %v172 = vld [vmem:[#allocation7 + $0x2c] sm:$0xf]
    %v173 = vld [vmem:[#allocation7 + $0x30] sm:$0xf]
    %v174 = vld [vmem:[#allocation7 + $0x34] sm:$0xf]
    %v175 = vld [vmem:[#allocation7 + $0x38] sm:$0xf]
    %v176 = vld [vmem:[#allocation7 + $0x3c] sm:$0xf]
    %v177 = vld [vmem:[%s4] sm:$0x1]
    %v179 = vperm.slane %v177, 0
    %v197 = vunpack.c.l.b16 %v161
    %v198 = vunpack.c.l.b16 %v162
    %v199 = vunpack.c.l.b16 %v163
    %v200 = vunpack.c.l.b16 %v164
    %v201 = vunpack.c.l.b16 %v165
    %v202 = vunpack.c.l.b16 %v166
    %v203 = vunpack.c.l.b16 %v167
    %v204 = vunpack.c.l.b16 %v168
    %v205 = vunpack.c.l.b16 %v169
    %v206 = vunpack.c.l.b16 %v170
    %v207 = vunpack.c.l.b16 %v171
    %v208 = vunpack.c.l.b16 %v172
    %v209 = vunpack.c.l.b16 %v173
    %v210 = vunpack.c.l.b16 %v174
    %v211 = vunpack.c.l.b16 %v175
    %v212 = vunpack.c.l.b16 %v176
    %v213 = vpack.c.b16 %v198, %v197
    %v214 = vpack.c.b16 %v200, %v199
    %v215 = vpack.c.b16 %v202, %v201
    %v216 = vpack.c.b16 %v204, %v203
    %v217 = vpack.c.b16 %v206, %v205
    %v218 = vpack.c.b16 %v208, %v207
    %v219 = vpack.c.b16 %v210, %v209
    %v220 = vpack.c.b16 %v212, %v211
    %229 = vmatpush.bf16.msra.mxu0 %v220
    %230 = vmatpush.bf16.msra.mxu0 %v219
    %231 = vmatpush.bf16.msra.mxu0 %v218
    %232 = vmatpush.bf16.msra.mxu0 %v217
    %233 = vmatpush.bf16.msra.mxu0 %v216
    %234 = vmatpush.bf16.msra.mxu0 %v215
    %235 = vmatpush.bf16.msra.mxu0 %v214
    %236 = vmatpush.bf16.msra.mxu0 %v213
    %237 = vmatmul.bf16.gmra.mxu0 %v160
    %v238 = vpop.f32.mrf.mxu0
    %v239 = vadd.f32 %v179, %v238
    %v240 = vpop.f32.mrf.mxu0
    %v241 = vadd.f32 %v179, %v240
    %242 = vdwg.mxu0
    %243 = vst [vmem:[#allocation8] sm:$0xff] %v239
    %244 = vst [vmem:[#allocation8 + $0x8] sm:$0xff] %v241
    // Predicated region
    $region34: #{tpu_custom_call.1} parent=1 // pred_check
      _
    $region35: #{tpu_custom_call.1} parent=1 // pred_check_branch
      %246 = sbr.rel (0) target = $region37
    $region36: #{tpu_custom_call.1} parent=1 // pred_region
      %248 = vsyncadd [#allocation4], 0
      %s249 = sshll.u32 [#allocation8], 4
      %s250 = int_to_ptr.vmem [resolvable:$true] %s249
      %s251 = sshll.u32 %s5, 4
      %s252 = int_to_ptr.hbm [resolvable:$true] %s251
      %257 = dma.vmem_to_hbm [thread:$0]  %s250, 256, %s252, [#allocation4], 128, 128, 8
    $region37: #{tpu_custom_call.1} parent=1 // pred_fallthru
      _
    // Predicated region
    $region38: #{tpu_custom_call.1} parent=1 // pred_check
      _
    $region39: #{tpu_custom_call.1} parent=1 // pred_check_branch
      %259 = sbr.rel (0) target = $region41
    $region40: #{tpu_custom_call.1} parent=1 // pred_region
      %261 = dma.done [#allocation4], 256
    $region41: #{tpu_custom_call.1} parent=1 // pred_fallthru
      _
    %262 = vsyncpa [#allocation3], 1
    %263 = vsyncpa [#allocation6], 1
    %264 = vsyncpa [#allocation4], 1

</llo_original>
